<compile_context>
chip_gen: v6e
topology: v6e:2x2x1
jax: 0.10.0
libtpu: 0.0.40
codegen_flags: <defaults>
</compile_context>

<pallas_src>
import functools

import jax
import jax.numpy as jnp
from jax.experimental import pallas as pl
from jax.experimental.pallas import tpu as pltpu

_LANE = 128
_SUBLANE = 8


def _round_up(n, m):
    return ((n + m - 1) // m) * m


def _pad2d(a, rows, cols):
    return jnp.pad(a, ((0, rows - a.shape[0]), (0, cols - a.shape[1])))


def _nbytes(a):
    return int(a.size) * jnp.dtype(a.dtype).itemsize


def _softplus(x):
    # stable softplus with a single exp + log1p per element (EUP-friendly)
    return jnp.maximum(x, 0.0) + jnp.log1p(jnp.exp(-jnp.abs(x)))


def _policy_kernel(num_hidden, std_start, std_min, act_p, *refs):
    """refs = (x, [wh_i, bh_i]*num_hidden, w_head, b_head, m_out, std_out).

    All refs are lane-padded (last dim multiple of 128). w_head/b_head are the
    fused [mean | std] head, each half padded to act_p lanes.
    """
    x_ref = refs[0]
    idx = 1
    h = x_ref[...].astype(jnp.float32)

    # hidden layers: tanh(h @ W + b)   (accumulate in f32 on the MXU)
    for _ in range(num_hidden):
        w_ref, b_ref = refs[idx], refs[idx + 1]
        idx += 2
        acc = jnp.dot(
            h.astype(w_ref.dtype), w_ref[...], preferred_element_type=jnp.float32
        )
        h = jnp.tanh(acc + b_ref[...].astype(jnp.float32))

    w_head_ref, b_head_ref = refs[idx], refs[idx + 1]
    m_ref, std_ref = refs[idx + 2], refs[idx + 3]

    # fused mean|std head: one wide matmul, then split on a lane-aligned boundary
    head = (
        jnp.dot(
            h.astype(w_head_ref.dtype),
            w_head_ref[...],
            preferred_element_type=jnp.float32,
        )
        + b_head_ref[...].astype(jnp.float32)
    )
    m = head[:, :act_p]
    s_pre = head[:, act_p:]
    std = _softplus(s_pre) * jnp.float32(std_start) + jnp.float32(std_min)

    m_ref[...] = m.astype(m_ref.dtype)
    std_ref[...] = std.astype(std_ref.dtype)


def gaussian_policy_forward(
    x,
    params,
    std_start=1.0,
    std_min=0.1,
    tile_b=512,
    weights_dtype=jnp.float32,
):
    """Run the GaussianPolicy forward in one batch-tiled Pallas kernel.

    params = {"hidden": [(W, b), ...], "mean": (Wm, bm), "std": (Ws, bs)}
    Weights are (in, out); biases are (out,) or (1, out).
    """
    hidden = params["hidden"]
    wm, bm = params["mean"]
    ws, bs = params["std"]
    num_hidden = len(hidden)

    batch, obs_dim = x.shape
    act_dim = wm.shape[1]

    # ---- padded geometry -------------------------------------------------
    obs_p = _round_up(obs_dim, _LANE)
    hid_p = [_round_up(w.shape[1], _LANE) for (w, _) in hidden]
    act_p = _round_up(act_dim, _LANE)

    tile_b = _round_up(min(tile_b, _round_up(batch, _SUBLANE)), _SUBLANE)
    batch_p = _round_up(batch, tile_b)
    grid = (batch_p // tile_b,)

    # ---- pad & flatten inputs; build BlockSpecs --------------------------
    x_p = _pad2d(x.astype(jnp.float32), batch_p, obs_p)
    flat_inputs = [x_p]
    in_specs = [pl.BlockSpec((tile_b, obs_p), lambda i: (i, 0))]

    prev_p = obs_p
    for (w, b) in hidden:
        out_p = _round_up(w.shape[1], _LANE)
        wp = _pad2d(w.astype(jnp.float32), prev_p, out_p).astype(weights_dtype)
        bp = _pad2d(jnp.asarray(b, jnp.float32).reshape(1, -1), 1, out_p)
        flat_inputs += [wp, bp]
        # constant index_map -> weight/bias blocks stay VMEM-resident over the grid
        in_specs += [
            pl.BlockSpec(wp.shape, lambda i: (0, 0)),
            pl.BlockSpec(bp.shape, lambda i: (0, 0)),
        ]
        prev_p = out_p

    # fused head: [Wm (padded to act_p) | Ws (padded to act_p)]
    wm_p = _pad2d(wm.astype(jnp.float32), prev_p, act_p)
    ws_p = _pad2d(ws.astype(jnp.float32), prev_p, act_p)
    w_head = jnp.concatenate([wm_p, ws_p], axis=1).astype(weights_dtype)
    bm_p = _pad2d(jnp.asarray(bm, jnp.float32).reshape(1, -1), 1, act_p)
    bs_p = _pad2d(jnp.asarray(bs, jnp.float32).reshape(1, -1), 1, act_p)
    b_head = jnp.concatenate([bm_p, bs_p], axis=1)
    flat_inputs += [w_head, b_head]
    in_specs += [
        pl.BlockSpec(w_head.shape, lambda i: (0, 0)),
        pl.BlockSpec(b_head.shape, lambda i: (0, 0)),
    ]

    out_specs = (
        pl.BlockSpec((tile_b, act_p), lambda i: (i, 0)),
        pl.BlockSpec((tile_b, act_p), lambda i: (i, 0)),
    )
    out_shape = (
        jax.ShapeDtypeStruct((batch_p, act_p), jnp.float32),
        jax.ShapeDtypeStruct((batch_p, act_p), jnp.float32),
    )

    # ---- VMEM budget (safe for v7x's 64 MiB) ------------------------------
    block_bytes = 2 * tile_b * obs_p * 4                 # double-buffered x tile
    block_bytes += 2 * 2 * tile_b * act_p * 4            # 2 double-buffered out tiles
    block_bytes += 2 * sum(_nbytes(a) for a in flat_inputs[1:])  # resident params
    scratch_bytes = 4 * tile_b * max([obs_p] + hid_p + [2 * act_p]) * 4
    vmem_limit = int(min(max(block_bytes + scratch_bytes + (4 << 20), 16 << 20),
                         56 << 20))

    # ---- cost hint for XLA scheduling -------------------------------------
    flops = 0
    prev = obs_p
    for hp in hid_p:
        flops += 2 * batch_p * prev * hp
        prev = hp
    flops += 2 * batch_p * prev * (2 * act_p)
    transcendentals = batch_p * (sum(hid_p) + 2 * act_p)
    bytes_accessed = sum(_nbytes(a) for a in flat_inputs) + 2 * batch_p * act_p * 4
    cost = pl.CostEstimate(
        flops=int(flops),
        transcendentals=int(transcendentals),
        bytes_accessed=int(bytes_accessed),
    )

    kernel = functools.partial(
        _policy_kernel, num_hidden, float(std_start), float(std_min), act_p
    )

    m_pad, std_pad = pl.pallas_call(
        kernel,
        grid=grid,
        in_specs=in_specs,
        out_specs=out_specs,
        out_shape=out_shape,
        compiler_params=pltpu.CompilerParams(
            dimension_semantics=("parallel",),   # v7x: shard batch over 2 TCs
            vmem_limit_bytes=vmem_limit,
        ),
        cost_estimate=cost,
    )(*flat_inputs)

    # strip batch/feature padding
    return m_pad[:batch, :act_dim], std_pad[:batch, :act_dim]


def init_params(key, net_arch):
    """Deterministic init mirroring GaussianPolicy.init:
    - hidden-layer weights: orthogonal
    - last two heads (mean, std): small weights (default-ish init / 100)
    - all biases zero
    """
    num_hidden = len(net_arch) - 2
    keys = jax.random.split(key, num_hidden + 2)

    def orthogonal(k, shape):
        a = jax.random.normal(k, shape, dtype=jnp.float32)
        q, r = jnp.linalg.qr(a if shape[0] >= shape[1] else a.T)
        q = q * jnp.sign(jnp.diag(r))[None, :]
        return q if shape[0] >= shape[1] else q.T

    hidden = []
    for i in range(num_hidden):
        fan_in, fan_out = net_arch[i], net_arch[i + 1]
        w = orthogonal(keys[i], (fan_in, fan_out)).astype(jnp.float32)
        b = jnp.zeros((1, fan_out), jnp.float32)
        hidden.append((w, b))

    fan_in, fan_out = net_arch[-2], net_arch[-1]
    bound = 1.0 / jnp.sqrt(jnp.float32(fan_in))
    wm = (
        jax.random.uniform(keys[-2], (fan_in, fan_out), jnp.float32, -bound, bound)
        / 100.0
    )
    ws = (
        jax.random.uniform(keys[-1], (fan_in, fan_out), jnp.float32, -bound, bound)
        / 100.0
    )
    bm = jnp.zeros((1, fan_out), jnp.float32)
    bs = jnp.zeros((1, fan_out), jnp.float32)

    return {"hidden": hidden, "mean": (wm, bm), "std": (ws, bs)}


def reference_forward(x, params, std_start=1.0, std_min=0.1):
    h = x.astype(jnp.float32)
    for (w, b) in params["hidden"]:
        h = jnp.tanh(h @ w + b)
    wm, bm = params["mean"]
    ws, bs = params["std"]
    m = h @ wm + bm
    std = jax.nn.softplus(h @ ws + bs) * std_start + std_min
    return m, std


if __name__ == "__main__":
    key = jax.random.PRNGKey(0)
    net_arch = [16, 32, 32, 8]  # obs_dim=16, two hidden of 32, act_dim=8
    batch = 8

    pkey, xkey = jax.random.split(key)
    params = init_params(pkey, net_arch)
    x = jax.random.normal(xkey, (batch, net_arch[0]), dtype=jnp.float32)

    m, std = gaussian_policy_forward(x, params, std_start=1.0, std_min=0.1)
    jax.block_until_ready((m, std))

    m_ref, std_ref = reference_forward(x, params, std_start=1.0, std_min=0.1)
    assert m.shape == (batch, net_arch[-1]) and std.shape == (batch, net_arch[-1])
    assert jnp.allclose(m, m_ref, atol=1e-5, rtol=1e-5)
    assert jnp.allclose(std, std_ref, atol=1e-5, rtol=1e-5)

    # TODO(synk): act() (clamp + Normal.rsample + log_prob) is sampling logic,
    # not part of forward(); left outside the kernel.
    print("KERNEL_OK")
</pallas_src>

<mosaic_0001>
module attributes {stable_mosaic.version = 11 : i64} {
  func.func @_policy_kernel(%arg0: i32, %arg1: memref<8x128xf32, #tpu.memory_space<vmem>>, %arg2: memref<128x128xf32, #tpu.memory_space<vmem>>, %arg3: memref<1x128xf32, #tpu.memory_space<vmem>>, %arg4: memref<128x128xf32, #tpu.memory_space<vmem>>, %arg5: memref<1x128xf32, #tpu.memory_space<vmem>>, %arg6: memref<128x256xf32, #tpu.memory_space<vmem>>, %arg7: memref<1x256xf32, #tpu.memory_space<vmem>>, %arg8: memref<8x128xf32, #tpu.memory_space<vmem>>, %arg9: memref<8x128xf32, #tpu.memory_space<vmem>>) attributes {dimension_semantics = [#tpu.dimension_semantics<parallel>], iteration_bounds = array<i64: 1>, scalar_prefetch = 0 : i64, scratch_operands = 0 : i64, tpu.core_type = #tpu.core_type<tc>, window_params = [{transform_indices = @transform_0, window_bounds = array<i64: 8, 128>}, {pipeline_mode = #tpu.pipeline_mode<synchronous>, transform_indices = @transform_1, window_bounds = array<i64: 128, 128>}, {pipeline_mode = #tpu.pipeline_mode<synchronous>, transform_indices = @transform_2, window_bounds = array<i64: 1, 128>}, {pipeline_mode = #tpu.pipeline_mode<synchronous>, transform_indices = @transform_3, window_bounds = array<i64: 128, 128>}, {pipeline_mode = #tpu.pipeline_mode<synchronous>, transform_indices = @transform_4, window_bounds = array<i64: 1, 128>}, {pipeline_mode = #tpu.pipeline_mode<synchronous>, transform_indices = @transform_5, window_bounds = array<i64: 128, 256>}, {pipeline_mode = #tpu.pipeline_mode<synchronous>, transform_indices = @transform_6, window_bounds = array<i64: 1, 256>}, {transform_indices = @transform_7, window_bounds = array<i64: 8, 128>}, {transform_indices = @transform_8, window_bounds = array<i64: 8, 128>}]} {
    %c0 = arith.constant 0 : index
    %c0_0 = arith.constant 0 : index
    %0 = vector.load %arg1[%c0, %c0_0] : memref<8x128xf32, #tpu.memory_space<vmem>>, vector<8x128xf32>
    %c0_1 = arith.constant 0 : index
    %c0_2 = arith.constant 0 : index
    %1 = vector.load %arg2[%c0_1, %c0_2] : memref<128x128xf32, #tpu.memory_space<vmem>>, vector<128x128xf32>
    %cst = arith.constant dense<0.000000e+00> : vector<8x128xf32>
    %2 = tpu.matmul %0, %1, %cst {dimension_numbers = #tpu.dot_dimension_numbers<[1], [0], [0], [1], [0, 0, 1, 1], [], []>} : vector<8x128xf32>, vector<128x128xf32>, vector<8x128xf32> -> vector<8x128xf32>
    %c0_3 = arith.constant 0 : index
    %c0_4 = arith.constant 0 : index
    %3 = vector.load %arg3[%c0_3, %c0_4] : memref<1x128xf32, #tpu.memory_space<vmem>>, vector<1x128xf32>
    %4 = vector.broadcast %3 : vector<1x128xf32> to vector<8x128xf32>
    %5 = arith.addf %2, %4 : vector<8x128xf32>
    %6 = math.tanh %5 : vector<8x128xf32>
    %c0_5 = arith.constant 0 : index
    %c0_6 = arith.constant 0 : index
    %7 = vector.load %arg4[%c0_5, %c0_6] : memref<128x128xf32, #tpu.memory_space<vmem>>, vector<128x128xf32>
    %cst_7 = arith.constant dense<0.000000e+00> : vector<8x128xf32>
    %8 = tpu.matmul %6, %7, %cst_7 {dimension_numbers = #tpu.dot_dimension_numbers<[1], [0], [0], [1], [0, 0, 1, 1], [], []>} : vector<8x128xf32>, vector<128x128xf32>, vector<8x128xf32> -> vector<8x128xf32>
    %c0_8 = arith.constant 0 : index
    %c0_9 = arith.constant 0 : index
    %9 = vector.load %arg5[%c0_8, %c0_9] : memref<1x128xf32, #tpu.memory_space<vmem>>, vector<1x128xf32>
    %10 = vector.broadcast %9 : vector<1x128xf32> to vector<8x128xf32>
    %11 = arith.addf %8, %10 : vector<8x128xf32>
    %12 = math.tanh %11 : vector<8x128xf32>
    %c0_10 = arith.constant 0 : index
    %c0_11 = arith.constant 0 : index
    %13 = vector.load %arg6[%c0_10, %c0_11] : memref<128x256xf32, #tpu.memory_space<vmem>>, vector<128x256xf32>
    %cst_12 = arith.constant dense<0.000000e+00> : vector<8x256xf32>
    %14 = tpu.matmul %12, %13, %cst_12 {dimension_numbers = #tpu.dot_dimension_numbers<[1], [0], [0], [1], [0, 0, 1, 1], [], []>} : vector<8x128xf32>, vector<128x256xf32>, vector<8x256xf32> -> vector<8x256xf32>
    %c0_13 = arith.constant 0 : index
    %c0_14 = arith.constant 0 : index
    %15 = vector.load %arg7[%c0_13, %c0_14] : memref<1x256xf32, #tpu.memory_space<vmem>>, vector<1x256xf32>
    %16 = vector.broadcast %15 : vector<1x256xf32> to vector<8x256xf32>
    %17 = arith.addf %14, %16 : vector<8x256xf32>
    %18 = vector.extract_strided_slice %17 {offsets = [0, 0], sizes = [8, 128], strides = [1, 1]} : vector<8x256xf32> to vector<8x128xf32>
    %19 = vector.extract_strided_slice %17 {offsets = [0, 128], sizes = [8, 128], strides = [1, 1]} : vector<8x256xf32> to vector<8x128xf32>
    %cst_15 = arith.constant 0.000000e+00 : f32
    %20 = vector.broadcast %cst_15 : f32 to vector<8x128xf32>
    %21 = arith.maximumf %19, %20 : vector<8x128xf32>
    %22 = math.absf %19 : vector<8x128xf32>
    %cst_16 = arith.constant 0.000000e+00 : f32
    %23 = vector.broadcast %cst_16 : f32 to vector<8x128xf32>
    %24 = arith.subf %23, %22 : vector<8x128xf32>
    %25 = math.exp %24 : vector<8x128xf32>
    %26 = math.log1p %25 : vector<8x128xf32>
    %27 = arith.addf %21, %26 : vector<8x128xf32>
    %cst_17 = arith.constant 1.000000e+00 : f32
    %28 = vector.broadcast %cst_17 : f32 to vector<8x128xf32>
    %29 = arith.mulf %27, %28 : vector<8x128xf32>
    %cst_18 = arith.constant 1.000000e-01 : f32
    %30 = vector.broadcast %cst_18 : f32 to vector<8x128xf32>
    %31 = arith.addf %29, %30 : vector<8x128xf32>
    %c0_19 = arith.constant 0 : index
    %c0_20 = arith.constant 0 : index
    %32 = vector.load %arg8[%c0_19, %c0_20] : memref<8x128xf32, #tpu.memory_space<vmem>>, vector<8x128xf32>
    tpu.vector_store %arg8[%c0_19, %c0_20], %18 {strides = array<i32>} : memref<8x128xf32, #tpu.memory_space<vmem>>, vector<8x128xf32>,
    %c0_21 = arith.constant 0 : index
    %c0_22 = arith.constant 0 : index
    %33 = vector.load %arg9[%c0_21, %c0_22] : memref<8x128xf32, #tpu.memory_space<vmem>>, vector<8x128xf32>
    tpu.vector_store %arg9[%c0_21, %c0_22], %31 {strides = array<i32>} : memref<8x128xf32, #tpu.memory_space<vmem>>, vector<8x128xf32>,
    return
  }
  func.func @transform_0(%arg0: i32) -> (i32, i32) {
    %c0_i32 = arith.constant 0 : i32
    %c0_i32_0 = arith.constant 0 : i32
    return %arg0, %c0_i32 : i32, i32
  }
  func.func @transform_1(%arg0: i32) -> (i32, i32) {
    %c0_i32 = arith.constant 0 : i32
    %c0_i32_0 = arith.constant 0 : i32
    %c0_i32_1 = arith.constant 0 : i32
    return %c0_i32, %c0_i32_0 : i32, i32
  }
  func.func @transform_2(%arg0: i32) -> (i32, i32) {
    %c0_i32 = arith.constant 0 : i32
    %c0_i32_0 = arith.constant 0 : i32
    %c0_i32_1 = arith.constant 0 : i32
    return %c0_i32, %c0_i32_0 : i32, i32
  }
  func.func @transform_3(%arg0: i32) -> (i32, i32) {
    %c0_i32 = arith.constant 0 : i32
    %c0_i32_0 = arith.constant 0 : i32
    %c0_i32_1 = arith.constant 0 : i32
    return %c0_i32, %c0_i32_0 : i32, i32
  }
  func.func @transform_4(%arg0: i32) -> (i32, i32) {
    %c0_i32 = arith.constant 0 : i32
    %c0_i32_0 = arith.constant 0 : i32
    %c0_i32_1 = arith.constant 0 : i32
    return %c0_i32, %c0_i32_0 : i32, i32
  }
  func.func @transform_5(%arg0: i32) -> (i32, i32) {
    %c0_i32 = arith.constant 0 : i32
    %c0_i32_0 = arith.constant 0 : i32
    %c0_i32_1 = arith.constant 0 : i32
    return %c0_i32, %c0_i32_0 : i32, i32
  }
  func.func @transform_6(%arg0: i32) -> (i32, i32) {
    %c0_i32 = arith.constant 0 : i32
    %c0_i32_0 = arith.constant 0 : i32
    %c0_i32_1 = arith.constant 0 : i32
    return %c0_i32, %c0_i32_0 : i32, i32
  }
  func.func @transform_7(%arg0: i32) -> (i32, i32) {
    %c0_i32 = arith.constant 0 : i32
    %c0_i32_0 = arith.constant 0 : i32
    return %arg0, %c0_i32 : i32, i32
  }
  func.func @transform_8(%arg0: i32) -> (i32, i32) {
    %c0_i32 = arith.constant 0 : i32
    %c0_i32_0 = arith.constant 0 : i32
    return %arg0, %c0_i32 : i32, i32
  }
}

</mosaic_0001>

<llo_original>
// kernel: tpu_custom_call.1
$region0: #{tpu_custom_call.1}
  #allocation0 [shape = 'u32[]', space=smem, size = 0x4, offset = 0x4, fixed_abs, tag = 'smem constant byte address 0x4 - core index']
  #allocation1 [shape = 'u32[144,128]{1,0:T(1,128)}', space=vmem, size = 0x12000, scoped, tag = 'internal scratch']
  %s0 = inlined_call_operand.hbm [shape: f32[8,128], index: 0, kind: input, shape index: {}]
  %s1 = inlined_call_operand.hbm [shape: f32[128,128], index: 1, kind: input, shape index: {}]
  %s2 = inlined_call_operand.vmem [shape: f32[1,128], index: 2, kind: input, shape index: {}]
  %s3 = inlined_call_operand.hbm [shape: f32[128,128], index: 3, kind: input, shape index: {}]
  %s4 = inlined_call_operand.vmem [shape: f32[1,128], index: 4, kind: input, shape index: {}]
  %s5 = inlined_call_operand.hbm [shape: f32[128,256], index: 5, kind: input, shape index: {}]
  %s6 = inlined_call_operand.vmem [shape: f32[1,256], index: 6, kind: input, shape index: {}]
  %s7 = inlined_call_operand.hbm [shape: f32[8,128], index: 7, kind: output, shape index: {0}]
  %s8 = inlined_call_operand.hbm [shape: f32[8,128], index: 8, kind: output, shape index: {1}]
  %9 = xla_tuple %s7, %s8
  %s10 = sld [smem:[#allocation0]]
  $region62: #{tpu_custom_call.1} parent=0
    _
  %s12 = ssub.s32 1, %s10
  %s13 = scalar_select 0, %s12, %s10
  $region1: #{tpu_custom_call.1} parent=0
    #allocation2 [shape = 'u8[4096]{0}', space=vmem, size = 0x1000, scoped, tag = 'input window, operand 0, single buffered']
    #allocation3 [shape = 's32[1]{0}', space=sflag, size = 0x4, scoped, tag = 'scoped memory for tpu_custom_call.1']
    #allocation4 [shape = 's32[1]{0}', space=sflag, size = 0x4, scoped, tag = 'scoped memory for tpu_custom_call.1']
    #allocation5 [shape = 'u8[65536]{0}', space=vmem, size = 0x10000, scoped, tag = 'input window, operand 1, single buffered']
    #allocation6 [shape = 's32[1]{0}', space=sflag, size = 0x4, scoped, tag = 'scoped memory for tpu_custom_call.1']
    #allocation7 [shape = 'u8[65536]{0}', space=vmem, size = 0x10000, scoped, tag = 'input window, operand 3, single buffered']
    #allocation8 [shape = 'u8[131072]{0}', space=vmem, size = 0x20000, scoped, tag = 'input window, operand 5, single buffered']
    #allocation9 [shape = 's32[1]{0}', space=sflag, size = 0x4, scoped, tag = 'scoped memory for tpu_custom_call.1']
    #allocation10 [shape = 'u8[4096]{0}', space=vmem, size = 0x1000, scoped, tag = 'output window, operand 0, single buffered']
    #allocation11 [shape = 'u8[4096]{0}', space=vmem, size = 0x1000, scoped, tag = 'output window, operand 1, single buffered']
    #allocation12 [shape = 's32[1]{0}', space=sflag, size = 0x4, scoped, tag = 'scoped memory for tpu_custom_call.1']
    %14 = vsyncpa [#allocation3], 0
    %15 = vsyncpa [#allocation6], 0
    %16 = vsyncpa [#allocation9], 0
    %17 = vsyncpa [#allocation4], 0
    %18 = vsyncpa [#allocation12], 0
    // Predicated region
    $region2: #{tpu_custom_call.1} parent=1 // pred_check
      _
    $region3: #{tpu_custom_call.1} parent=1 // pred_check_branch
      %20 = sbr.rel (0) target = $region5
    $region4: #{tpu_custom_call.1} parent=1 // pred_region
      %s22 = ssub.s32 128, 128
      %23 = vsyncadd [#allocation3], %s22
      %s25 = sshll.u32 [#allocation2], 4
      %s26 = int_to_ptr.vmem [resolvable:$true] %s25
      %28 = dma.hbm_to_vmem [thread:$0]  %s0, 128, %s26, [#allocation3]
    $region5: #{tpu_custom_call.1} parent=1 // pred_fallthru
      _
    // Predicated region
    $region6: #{tpu_custom_call.1} parent=1 // pred_check
      _
    $region7: #{tpu_custom_call.1} parent=1 // pred_check_branch
      %30 = sbr.rel (0) target = $region9
    $region8: #{tpu_custom_call.1} parent=1 // pred_region
      %s32 = ssub.s32 2048, 2048
      %33 = vsyncadd [#allocation6], %s32
      %s34 = sshll.u32 [#allocation5], 4
      %s35 = int_to_ptr.vmem [resolvable:$true] %s34
      %40 = dma.hbm_to_vmem [thread:$0]  %s1, 2048, %s35, [#allocation6], 128, 128, 8
    $region9: #{tpu_custom_call.1} parent=1 // pred_fallthru
      _
    // Predicated region
    $region10: #{tpu_custom_call.1} parent=1 // pred_check
      _
    $region11: #{tpu_custom_call.1} parent=1 // pred_check_branch
      %42 = sbr.rel (0) target = $region13
    $region12: #{tpu_custom_call.1} parent=1 // pred_region
      _
    $region13: #{tpu_custom_call.1} parent=1 // pred_fallthru
      _
    // Predicated region
    $region14: #{tpu_custom_call.1} parent=1 // pred_check
      _
    $region15: #{tpu_custom_call.1} parent=1 // pred_check_branch
      %44 = sbr.rel (0) target = $region17
    $region16: #{tpu_custom_call.1} parent=1 // pred_region
      %s46 = ssub.s32 2048, 2048
      %47 = vsyncadd [#allocation6], %s46
      %s48 = sshll.u32 [#allocation7], 4
      %s49 = int_to_ptr.vmem [resolvable:$true] %s48
      %54 = dma.hbm_to_vmem [thread:$0]  %s3, 2048, %s49, [#allocation6], 128, 128, 8
    $region17: #{tpu_custom_call.1} parent=1 // pred_fallthru
      _
    // Predicated region
    $region18: #{tpu_custom_call.1} parent=1 // pred_check
      _
    $region19: #{tpu_custom_call.1} parent=1 // pred_check_branch
      %56 = sbr.rel (0) target = $region21
    $region20: #{tpu_custom_call.1} parent=1 // pred_region
      _
    $region21: #{tpu_custom_call.1} parent=1 // pred_fallthru
      _
    // Predicated region
    $region22: #{tpu_custom_call.1} parent=1 // pred_check
      _
    $region23: #{tpu_custom_call.1} parent=1 // pred_check_branch
      %58 = sbr.rel (0) target = $region25
    $region24: #{tpu_custom_call.1} parent=1 // pred_region
      %s60 = ssub.s32 4096, 4096
      %61 = vsyncadd [#allocation9], %s60
      %s62 = sshll.u32 [#allocation8], 4
      %s63 = int_to_ptr.vmem [resolvable:$true] %s62
      %68 = dma.hbm_to_vmem [thread:$0]  %s5, 4096, %s63, [#allocation9], 256, 256, 16
    $region25: #{tpu_custom_call.1} parent=1 // pred_fallthru
      _
    // Predicated region
    $region26: #{tpu_custom_call.1} parent=1 // pred_check
      _
    $region27: #{tpu_custom_call.1} parent=1 // pred_check_branch
      %70 = sbr.rel (0) target = $region29
    $region28: #{tpu_custom_call.1} parent=1 // pred_region
      _
    $region29: #{tpu_custom_call.1} parent=1 // pred_fallthru
      _
    // Predicated region
    $region30: #{tpu_custom_call.1} parent=1 // pred_check
      _
    $region31: #{tpu_custom_call.1} parent=1 // pred_check_branch
      %72 = sbr.rel (0) target = $region33
    $region32: #{tpu_custom_call.1} parent=1 // pred_region
      %73 = dma.done [#allocation3], 128
    $region33: #{tpu_custom_call.1} parent=1 // pred_fallthru
      _
    // Predicated region
    $region34: #{tpu_custom_call.1} parent=1 // pred_check
      _
    $region35: #{tpu_custom_call.1} parent=1 // pred_check_branch
      %75 = sbr.rel (0) target = $region37
    $region36: #{tpu_custom_call.1} parent=1 // pred_region
      %76 = dma.done [#allocation6], 2048
    $region37: #{tpu_custom_call.1} parent=1 // pred_fallthru
      _
    // Predicated region
    $region38: #{tpu_custom_call.1} parent=1 // pred_check
      _
    $region39: #{tpu_custom_call.1} parent=1 // pred_check_branch
      %78 = sbr.rel (0) target = $region41
    $region40: #{tpu_custom_call.1} parent=1 // pred_region
      %79 = dma.done [#allocation6], 2048
    $region41: #{tpu_custom_call.1} parent=1 // pred_fallthru
      _
    // Predicated region
    $region42: #{tpu_custom_call.1} parent=1 // pred_check
      _
    $region43: #{tpu_custom_call.1} parent=1 // pred_check_branch
      %81 = sbr.rel (0) target = $region45
    $region44: #{tpu_custom_call.1} parent=1 // pred_region
      %82 = dma.done [#allocation9], 4096
    $region45: #{tpu_custom_call.1} parent=1 // pred_fallthru
      _
    %v83 = vld [vmem:[#allocation2] sm:$0xff]
    %v84 = vld [vmem:[#allocation5] sm:$0xff]
    %v85 = vld [vmem:[#allocation5 + $0x8] sm:$0xff]
    %v86 = vld [vmem:[#allocation5 + $0x10] sm:$0xff]
    %v87 = vld [vmem:[#allocation5 + $0x18] sm:$0xff]
    %v88 = vld [vmem:[#allocation5 + $0x20] sm:$0xff]
    %v89 = vld [vmem:[#allocation5 + $0x28] sm:$0xff]
    %v90 = vld [vmem:[#allocation5 + $0x30] sm:$0xff]
    %v91 = vld [vmem:[#allocation5 + $0x38] sm:$0xff]
    %v92 = vld [vmem:[#allocation5 + $0x40] sm:$0xff]
    %v93 = vld [vmem:[#allocation5 + $0x48] sm:$0xff]
    %v94 = vld [vmem:[#allocation5 + $0x50] sm:$0xff]
    %v95 = vld [vmem:[#allocation5 + $0x58] sm:$0xff]
    %v96 = vld [vmem:[#allocation5 + $0x60] sm:$0xff]
    %v97 = vld [vmem:[#allocation5 + $0x68] sm:$0xff]
    %v98 = vld [vmem:[#allocation5 + $0x70] sm:$0xff]
    %v99 = vld [vmem:[#allocation5 + $0x78] sm:$0xff]
    %v100 = vld [vmem:[%s2] sm:$0x1]
    %v102 = vlaneseq
    %v103 = vshrl.u32 %v102, 7
    %v104 = vsub.s32 0, %v103
    %v105 = vrot.slane %v100, %v104
    %107 = vmatprep.subr.mxu0 0.0
    %108 = vmatpush1.msra.mxu0 %v99
    %109 = vmatprep.subr.mxu0 0.0
    %110 = vmatpush1.msra.mxu0 %v98
    %111 = vmatprep.subr.mxu0 0.0
    %112 = vmatpush1.msra.mxu0 %v97
    %113 = vmatprep.subr.mxu0 0.0
    %114 = vmatpush1.msra.mxu0 %v96
    %115 = vmatprep.subr.mxu0 0.0
    %116 = vmatpush1.msra.mxu0 %v95
    %117 = vmatprep.subr.mxu0 0.0
    %118 = vmatpush1.msra.mxu0 %v94
    %119 = vmatprep.subr.mxu0 0.0
    %120 = vmatpush1.msra.mxu0 %v93
    %121 = vmatprep.subr.mxu0 0.0
    %122 = vmatpush1.msra.mxu0 %v92
    %123 = vmatprep.subr.mxu0 0.0
    %124 = vmatpush1.msra.mxu0 %v91
    %125 = vmatprep.subr.mxu0 0.0
    %126 = vmatpush1.msra.mxu0 %v90
    %127 = vmatprep.subr.mxu0 0.0
    %128 = vmatpush1.msra.mxu0 %v89
    %129 = vmatprep.subr.mxu0 0.0
    %130 = vmatpush1.msra.mxu0 %v88
    %131 = vmatprep.subr.mxu0 0.0
    %132 = vmatpush1.msra.mxu0 %v87
    %133 = vmatprep.subr.mxu0 0.0
    %134 = vmatpush1.msra.mxu0 %v86
    %135 = vmatprep.subr.mxu0 0.0
    %136 = vmatpush1.msra.mxu0 %v85
    %137 = vmatprep.subr.mxu0 0.0
    %138 = vmatpush1.msra.mxu0 %v84
    %139 = vmatprep.subr.mxu0 0.0
    %140 = vmatpush2.msra.mxu0 0.0
    %141 = vmatprep.subr.mxu0 0.0
    %142 = vmatpush2.msra.mxu0 0.0
    %143 = vmatprep.subr.mxu0 0.0
    %144 = vmatpush2.msra.mxu0 0.0
    %145 = vmatprep.subr.mxu0 0.0
    %146 = vmatpush2.msra.mxu0 0.0
    %147 = vmatprep.subr.mxu0 0.0
    %148 = vmatpush2.msra.mxu0 0.0
    %149 = vmatprep.subr.mxu0 0.0
    %150 = vmatpush2.msra.mxu0 0.0
    %151 = vmatprep.subr.mxu0 0.0
    %152 = vmatpush2.msra.mxu0 0.0
    %153 = vmatprep.subr.mxu0 0.0
    %154 = vmatpush2.msra.mxu0 0.0
    %155 = vmatprep.subr.mxu0 0.0
    %156 = vmatpush2.msra.mxu0 0.0
    %157 = vmatprep.subr.mxu0 0.0
    %158 = vmatpush2.msra.mxu0 0.0
    %159 = vmatprep.subr.mxu0 0.0
    %160 = vmatpush2.msra.mxu0 0.0
    %161 = vmatprep.subr.mxu0 0.0
    %162 = vmatpush2.msra.mxu0 0.0
    %163 = vmatprep.subr.mxu0 0.0
    %164 = vmatpush2.msra.mxu0 0.0
    %165 = vmatprep.subr.mxu0 0.0
    %166 = vmatpush2.msra.mxu0 0.0
    %167 = vmatprep.subr.mxu0 0.0
    %168 = vmatpush2.msra.mxu0 0.0
    %169 = vmatprep.subr.mxu0 0.0
    %170 = vmatpush2.msra.mxu0 0.0
    %171 = vmatprep.mubr.f32.mxu0 0.0
    %172 = vmatmul.mubr.f32.gmra.mxu0 %v83
    %v173 = vpop.f32.mrf.mxu0
    %v174 = vadd.f32 %v105, %v173
    %v175 = vpop.f32.mrf.mxu0
    %176 = vdwg.mxu0
    %v177 = vtanh.pop %v174
    %v178 = vld [vmem:[#allocation7] sm:$0xff]
    %v179 = vld [vmem:[#allocation7 + $0x8] sm:$0xff]
    %v180 = vld [vmem:[#allocation7 + $0x10] sm:$0xff]
    %v181 = vld [vmem:[#allocation7 + $0x18] sm:$0xff]
    %v182 = vld [vmem:[#allocation7 + $0x20] sm:$0xff]
    %v183 = vld [vmem:[#allocation7 + $0x28] sm:$0xff]
    %v184 = vld [vmem:[#allocation7 + $0x30] sm:$0xff]
    %v185 = vld [vmem:[#allocation7 + $0x38] sm:$0xff]
    %v186 = vld [vmem:[#allocation7 + $0x40] sm:$0xff]
    %v187 = vld [vmem:[#allocation7 + $0x48] sm:$0xff]
    %v188 = vld [vmem:[#allocation7 + $0x50] sm:$0xff]
    %v189 = vld [vmem:[#allocation7 + $0x58] sm:$0xff]
    %v190 = vld [vmem:[#allocation7 + $0x60] sm:$0xff]
    %v191 = vld [vmem:[#allocation7 + $0x68] sm:$0xff]
    %v192 = vld [vmem:[#allocation7 + $0x70] sm:$0xff]
    %v193 = vld [vmem:[#allocation7 + $0x78] sm:$0xff]
    %v194 = vld [vmem:[%s4] sm:$0x1]
    %v196 = vlaneseq
    %v197 = vshrl.u32 %v196, 7
    %v198 = vsub.s32 0, %v197
    %v199 = vrot.slane %v194, %v198
    %201 = vmatprep.subr.mxu0 0.0
    %202 = vmatpush1.msra.mxu0 %v193
    %203 = vmatprep.subr.mxu0 0.0
    %204 = vmatpush1.msra.mxu0 %v192
    %205 = vmatprep.subr.mxu0 0.0
    %206 = vmatpush1.msra.mxu0 %v191
    %207 = vmatprep.subr.mxu0 0.0
    %208 = vmatpush1.msra.mxu0 %v190
    %209 = vmatprep.subr.mxu0 0.0
    %210 = vmatpush1.msra.mxu0 %v189
    %211 = vmatprep.subr.mxu0 0.0
    %212 = vmatpush1.msra.mxu0 %v188
    %213 = vmatprep.subr.mxu0 0.0
    %214 = vmatpush1.msra.mxu0 %v187
    %215 = vmatprep.subr.mxu0 0.0
    %216 = vmatpush1.msra.mxu0 %v186
    %217 = vmatprep.subr.mxu0 0.0
    %218 = vmatpush1.msra.mxu0 %v185
    %219 = vmatprep.subr.mxu0 0.0
    %220 = vmatpush1.msra.mxu0 %v184
    %221 = vmatprep.subr.mxu0 0.0
    %222 = vmatpush1.msra.mxu0 %v183
    %223 = vmatprep.subr.mxu0 0.0
    %224 = vmatpush1.msra.mxu0 %v182
    %225 = vmatprep.subr.mxu0 0.0
    %226 = vmatpush1.msra.mxu0 %v181
    %227 = vmatprep.subr.mxu0 0.0
    %228 = vmatpush1.msra.mxu0 %v180
    %229 = vmatprep.subr.mxu0 0.0
    %230 = vmatpush1.msra.mxu0 %v179
    %231 = vmatprep.subr.mxu0 0.0
    %232 = vmatpush1.msra.mxu0 %v178
    %233 = vmatprep.subr.mxu0 0.0
    %234 = vmatpush2.msra.mxu0 0.0
    %235 = vmatprep.subr.mxu0 0.0
    %236 = vmatpush2.msra.mxu0 0.0
    %237 = vmatprep.subr.mxu0 0.0
    %238 = vmatpush2.msra.mxu0 0.0
    %239 = vmatprep.subr.mxu0 0.0
    %240 = vmatpush2.msra.mxu0 0.0
    %241 = vmatprep.subr.mxu0 0.0
    %242 = vmatpush2.msra.mxu0 0.0
    %243 = vmatprep.subr.mxu0 0.0
    %244 = vmatpush2.msra.mxu0 0.0
    %245 = vmatprep.subr.mxu0 0.0
    %246 = vmatpush2.msra.mxu0 0.0
    %247 = vmatprep.subr.mxu0 0.0
    %248 = vmatpush2.msra.mxu0 0.0
    %249 = vmatprep.subr.mxu0 0.0
    %250 = vmatpush2.msra.mxu0 0.0
    %251 = vmatprep.subr.mxu0 0.0
    %252 = vmatpush2.msra.mxu0 0.0
    %253 = vmatprep.subr.mxu0 0.0
    %254 = vmatpush2.msra.mxu0 0.0
    %255 = vmatprep.subr.mxu0 0.0
    %256 = vmatpush2.msra.mxu0 0.0
    %257 = vmatprep.subr.mxu0 0.0
    %258 = vmatpush2.msra.mxu0 0.0
    %259 = vmatprep.subr.mxu0 0.0
    %260 = vmatpush2.msra.mxu0 0.0
    %261 = vmatprep.subr.mxu0 0.0
    %262 = vmatpush2.msra.mxu0 0.0
    %263 = vmatprep.subr.mxu0 0.0
    %264 = vmatpush2.msra.mxu0 0.0
    %265 = vmatprep.mubr.f32.mxu0 0.0
    %266 = vmatmul.mubr.f32.gmra.mxu0 %v177
    %v267 = vpop.f32.mrf.mxu0
    %v268 = vadd.f32 %v199, %v267
    %v269 = vpop.f32.mrf.mxu0
    %270 = vdwg.mxu0
    %v271 = vtanh.pop %v268
    %v272 = vld [vmem:[#allocation8] sm:$0xff]
    %v273 = vld [vmem:[#allocation8 + $0x8] sm:$0xff]
    %v274 = vld [vmem:[#allocation8 + $0x10] sm:$0xff]
    %v275 = vld [vmem:[#allocation8 + $0x18] sm:$0xff]
    %v276 = vld [vmem:[#allocation8 + $0x20] sm:$0xff]
    %v277 = vld [vmem:[#allocation8 + $0x28] sm:$0xff]
    %v278 = vld [vmem:[#allocation8 + $0x30] sm:$0xff]
    %v279 = vld [vmem:[#allocation8 + $0x38] sm:$0xff]
    %v280 = vld [vmem:[#allocation8 + $0x40] sm:$0xff]
    %v281 = vld [vmem:[#allocation8 + $0x48] sm:$0xff]
    %v282 = vld [vmem:[#allocation8 + $0x50] sm:$0xff]
    %v283 = vld [vmem:[#allocation8 + $0x58] sm:$0xff]
    %v284 = vld [vmem:[#allocation8 + $0x60] sm:$0xff]
    %v285 = vld [vmem:[#allocation8 + $0x68] sm:$0xff]
    %v286 = vld [vmem:[#allocation8 + $0x70] sm:$0xff]
    %v287 = vld [vmem:[#allocation8 + $0x78] sm:$0xff]
    %v288 = vld [vmem:[#allocation8 + $0x80] sm:$0xff]
    %v289 = vld [vmem:[#allocation8 + $0x88] sm:$0xff]
    %v290 = vld [vmem:[#allocation8 + $0x90] sm:$0xff]
    %v291 = vld [vmem:[#allocation8 + $0x98] sm:$0xff]
    %v292 = vld [vmem:[#allocation8 + $0xa0] sm:$0xff]
    %v293 = vld [vmem:[#allocation8 + $0xa8] sm:$0xff]
    %v294 = vld [vmem:[#allocation8 + $0xb0] sm:$0xff]
    %v295 = vld [vmem:[#allocation8 + $0xb8] sm:$0xff]
    %v296 = vld [vmem:[#allocation8 + $0xc0] sm:$0xff]
    %v297 = vld [vmem:[#allocation8 + $0xc8] sm:$0xff]
    %v298 = vld [vmem:[#allocation8 + $0xd0] sm:$0xff]
    %v299 = vld [vmem:[#allocation8 + $0xd8] sm:$0xff]
    %v300 = vld [vmem:[#allocation8 + $0xe0] sm:$0xff]
    %v301 = vld [vmem:[#allocation8 + $0xe8] sm:$0xff]
    %v302 = vld [vmem:[#allocation8 + $0xf0] sm:$0xff]
    %v303 = vld [vmem:[#allocation8 + $0xf8] sm:$0xff]
    %v304 = vld [vmem:[%s6] sm:$0x3]
    %v306 = vlaneseq
    %v307 = vshrl.u32 %v306, 7
    %v308 = vsub.s32 0, %v307
    %v309 = vrot.slane %v304, %v308
    %v310 = vlaneseq
    %v311 = vshrl.u32 %v310, 7
    %v312 = vsub.s32 1, %v311
    %v313 = vrot.slane %v304, %v312
    %316 = vmatprep.subr.mxu0 %v303
    %317 = vmatpush1.msra.mxu0 %v302
    %318 = vmatprep.subr.mxu0 %v301
    %319 = vmatpush1.msra.mxu0 %v300
    %320 = vmatprep.subr.mxu0 %v299
    %321 = vmatpush1.msra.mxu0 %v298
    %322 = vmatprep.subr.mxu0 %v297
    %323 = vmatpush1.msra.mxu0 %v296
    %324 = vmatprep.subr.mxu0 %v295
    %325 = vmatpush1.msra.mxu0 %v294
    %326 = vmatprep.subr.mxu0 %v293
    %327 = vmatpush1.msra.mxu0 %v292
    %328 = vmatprep.subr.mxu0 %v291
    %329 = vmatpush1.msra.mxu0 %v290
    %330 = vmatprep.subr.mxu0 %v289
    %331 = vmatpush1.msra.mxu0 %v288
    %332 = vmatprep.subr.mxu0 %v287
    %333 = vmatpush1.msra.mxu0 %v286
    %334 = vmatprep.subr.mxu0 %v285
    %335 = vmatpush1.msra.mxu0 %v284
    %336 = vmatprep.subr.mxu0 %v283
    %337 = vmatpush1.msra.mxu0 %v282
    %338 = vmatprep.subr.mxu0 %v281
    %339 = vmatpush1.msra.mxu0 %v280
    %340 = vmatprep.subr.mxu0 %v279
    %341 = vmatpush1.msra.mxu0 %v278
    %342 = vmatprep.subr.mxu0 %v277
    %343 = vmatpush1.msra.mxu0 %v276
    %344 = vmatprep.subr.mxu0 %v275
    %345 = vmatpush1.msra.mxu0 %v274
    %346 = vmatprep.subr.mxu0 %v273
    %347 = vmatpush1.msra.mxu0 %v272
    %348 = vmatprep.subr.mxu0 0.0
    %349 = vmatpush2.msra.mxu0 0.0
    %350 = vmatprep.subr.mxu0 0.0
    %351 = vmatpush2.msra.mxu0 0.0
    %352 = vmatprep.subr.mxu0 0.0
    %353 = vmatpush2.msra.mxu0 0.0
    %354 = vmatprep.subr.mxu0 0.0
    %355 = vmatpush2.msra.mxu0 0.0
    %356 = vmatprep.subr.mxu0 0.0
    %357 = vmatpush2.msra.mxu0 0.0
    %358 = vmatprep.subr.mxu0 0.0
    %359 = vmatpush2.msra.mxu0 0.0
    %360 = vmatprep.subr.mxu0 0.0
    %361 = vmatpush2.msra.mxu0 0.0
    %362 = vmatprep.subr.mxu0 0.0
    %363 = vmatpush2.msra.mxu0 0.0
    %364 = vmatprep.subr.mxu0 0.0
    %365 = vmatpush2.msra.mxu0 0.0
    %366 = vmatprep.subr.mxu0 0.0
    %367 = vmatpush2.msra.mxu0 0.0
    %368 = vmatprep.subr.mxu0 0.0
    %369 = vmatpush2.msra.mxu0 0.0
    %370 = vmatprep.subr.mxu0 0.0
    %371 = vmatpush2.msra.mxu0 0.0
    %372 = vmatprep.subr.mxu0 0.0
    %373 = vmatpush2.msra.mxu0 0.0
    %374 = vmatprep.subr.mxu0 0.0
    %375 = vmatpush2.msra.mxu0 0.0
    %376 = vmatprep.subr.mxu0 0.0
    %377 = vmatpush2.msra.mxu0 0.0
    %378 = vmatprep.subr.mxu0 0.0
    %379 = vmatpush2.msra.mxu0 0.0
    %380 = vmatprep.mubr.f32.mxu0 0.0
    %381 = vmatmul.mubr.f32.gmra.mxu0 %v271
    %v382 = vpop.f32.mrf.mxu0
    %v383 = vadd.f32 %v309, %v382
    %v384 = vpop.f32.mrf.mxu0
    %v385 = vadd.f32 %v313, %v384
    %386 = vdwg.mxu0
    %v387 = vmax.f32 %v385, 0.0
    %v388 = vand.u32 2147483647, %v385
    %v389 = vsub.f32 0.0, %v388
    %v390 = vmul.f32 %v389, 1.442695
    %v391 = vpow.pop %v390
    %v392 = vadd.f32 %v391, 1.0
    %v393 = vlog2.pop %v392
    %v394 = vmul.f32 %v393, 0.6931472
    %v395 = vmul.f32 -0.5, %v391
    %v396 = vadd.f32 %v395, 1.0
    %v397 = vmul.f32 %v396, %v391
    %v398 = vand.u32 2147483647, %v391
    %vm399 = vcmp.lt.f32.partialorder %v398, 0.0004427343
    %v400 = vsel %vm399, %v397, %v394
    %v401 = vadd.f32 %v387, %v400
    %v402 = vadd.f32 %v401, 0.1
    %403 = vst [vmem:[#allocation10] sm:$0xff] %v383
    %404 = vst [vmem:[#allocation11] sm:$0xff] %v402
    // Predicated region
    $region46: #{tpu_custom_call.1} parent=1 // pred_check
      _
    $region47: #{tpu_custom_call.1} parent=1 // pred_check_branch
      %406 = sbr.rel (0) target = $region49
    $region48: #{tpu_custom_call.1} parent=1 // pred_region
      %s408 = ssub.s32 128, 128
      %409 = vsyncadd [#allocation4], %s408
      %s411 = sshll.u32 [#allocation10], 4
      %s412 = int_to_ptr.vmem [resolvable:$true] %s411
      %414 = dma.vmem_to_hbm [thread:$0]  %s412, 128, %s7, [#allocation4]
    $region49: #{tpu_custom_call.1} parent=1 // pred_fallthru
      _
    // Predicated region
    $region50: #{tpu_custom_call.1} parent=1 // pred_check
      _
    $region51: #{tpu_custom_call.1} parent=1 // pred_check_branch
      %416 = sbr.rel (0) target = $region53
    $region52: #{tpu_custom_call.1} parent=1 // pred_region
      %s418 = ssub.s32 128, 128
      %419 = vsyncadd [#allocation12], %s418
      %s421 = sshll.u32 [#allocation11], 4
      %s422 = int_to_ptr.vmem [resolvable:$true] %s421
      %424 = dma.vmem_to_hbm [thread:$0]  %s422, 128, %s8, [#allocation12]
    $region53: #{tpu_custom_call.1} parent=1 // pred_fallthru
      _
    // Predicated region
    $region54: #{tpu_custom_call.1} parent=1 // pred_check
      _
    $region55: #{tpu_custom_call.1} parent=1 // pred_check_branch
      %426 = sbr.rel (0) target = $region57
    $region56: #{tpu_custom_call.1} parent=1 // pred_region
      %427 = dma.done [#allocation4], 128
    $region57: #{tpu_custom_call.1} parent=1 // pred_fallthru
      _
    // Predicated region
    $region58: #{tpu_custom_call.1} parent=1 // pred_check
      _
    $region59: #{tpu_custom_call.1} parent=1 // pred_check_branch
      %429 = sbr.rel (0) target = $region61
    $region60: #{tpu_custom_call.1} parent=1 // pred_region
      %430 = dma.done [#allocation12], 128
    $region61: #{tpu_custom_call.1} parent=1 // pred_fallthru
      _
    %431 = vsyncpa [#allocation3], 1
    %432 = vsyncpa [#allocation6], 1
    %433 = vsyncpa [#allocation9], 1
    %434 = vsyncpa [#allocation4], 1
    %435 = vsyncpa [#allocation12], 1

</llo_original>
